<compile_context>
chip_gen: v5e
topology: v5e:2x2
jax: 0.10.0
libtpu: 0.0.40
codegen_flags: <defaults>
</compile_context>

<pallas_src>
import jax
import jax.numpy as jnp
from jax.experimental import pallas as pl
from jax.experimental.pallas import tpu as pltpu

INPUT = 2
HIDDEN = 3
OUT = 10
KF1 = INPUT + HIDDEN + 1        # [x | h | 1]  rows feeding the fused gate matmul
SLAB_IN = KF1 + HIDDEN          # + c rows  -> 9
SLAB_OUT = OUT + HIDDEN         # [lin(h1) | c1] -> 13


def _round_up(n, m):
    return (n + m - 1) // m * m


def _lstm_linear_kernel(slab_ref, wg_ref, wl_ref, bl_ref, out_ref):
    # slab_ref: (9, tb), rows = [x (2) | h (3) | 1 (1) | c (3)], batch on lanes.
    slab = slab_ref[...]
    xh1 = slab[0:KF1, :]                     # (6, tb)
    c = slab[KF1:SLAB_IN, :]                 # (3, tb)

    # Fused gate matmul, bias folded via the constant-1 row:
    #   gates = [W_ih | W_hh | b_ih+b_hh] (12, 6) @ [x; h; 1] (6, tb)
    gates = jnp.dot(wg_ref[...], xh1, preferred_element_type=jnp.float32)

    H = HIDDEN
    i_g = jax.nn.sigmoid(gates[0 * H:1 * H, :])
    f_g = jax.nn.sigmoid(gates[1 * H:2 * H, :])
    g_g = jnp.tanh(gates[2 * H:3 * H, :])
    o_g = jax.nn.sigmoid(gates[3 * H:4 * H, :])

    c_new = f_g * c + i_g * g_g              # (3, tb)
    h_new = o_g * jnp.tanh(c_new)            # (3, tb)

    # Linear(3, 10): W_lin (10, 3) @ h_new (3, tb) + b_lin (10, 1)
    lin = (jnp.dot(wl_ref[...], h_new, preferred_element_type=jnp.float32)
           + bl_ref[...])                    # (10, tb)

    # Single lane-dense output slab: rows 0..9 = linear(h1), rows 10..12 = c1.
    out_ref[0:OUT, :] = lin
    out_ref[OUT:SLAB_OUT, :] = c_new


def _pick_tile(B, max_tile_b):
    """Lane tile (multiple of 128).  Small B: one big step.  Large B: keep >= 2
    grid steps so the ("parallel",) axis can use both v7x TensorCores."""
    max_tile_b = max(128, (max_tile_b // 128) * 128)
    b128 = _round_up(B, 128)
    if b128 <= 2 * 128:
        return b128
    half = _round_up((b128 + 1) // 2, 128)
    return min(max_tile_b, half)


def lstm_unit_linear(x, h0, c0, w_ih, w_hh, b_ih, b_hh, w_lin, b_lin,
                     *, max_tile_b=2048):
    """x: (B, 2), h0/c0: (B, 3).  Weights in PyTorch layout:
       w_ih (12, 2), w_hh (12, 3), b_ih/b_hh (12,), w_lin (10, 3), b_lin (10,).
       Returns (linear(h1) (B, 10), c1 (B, 3))."""
    f32 = jnp.float32
    B = x.shape[0]

    # ---- trace-time weight fusion (constant-folded by XLA) ----------------
    w_gate = jnp.concatenate(
        [jnp.asarray(w_ih, f32), jnp.asarray(w_hh, f32),
         (jnp.asarray(b_ih, f32) + jnp.asarray(b_hh, f32)).reshape(-1, 1)],
        axis=1)                                      # (12, 6)
    w_lin2 = jnp.asarray(w_lin, f32)                 # (10, 3)
    b_lin2 = jnp.asarray(b_lin, f32).reshape(-1, 1)  # (10, 1)

    # ---- batch-on-lanes input slab: rows = [x | h | 1 | c], lanes = batch ---
    tb = _pick_tile(B, max_tile_b)
    Bp = _round_up(B, tb)
    grid = (Bp // tb,)

    slab = jnp.concatenate(
        [x.astype(f32).T, h0.astype(f32).T,
         jnp.ones((1, B), f32), c0.astype(f32).T], axis=0)   # (9, B)
    if Bp != B:
        slab = jnp.pad(slab, ((0, 0), (0, Bp - B)))

    def resident(r, c):
        # Same block every grid step -> fetched once, stays VMEM-resident.
        return pl.BlockSpec((r, c), lambda i: (0, 0))

    out = pl.pallas_call(
        _lstm_linear_kernel,
        out_shape=jax.ShapeDtypeStruct((SLAB_OUT, Bp), f32),
        grid=grid,
        in_specs=[pl.BlockSpec((SLAB_IN, tb), lambda i: (0, i)),   # [x|h|1|c]
                  resident(4 * HIDDEN, KF1),                       # fused gate W+b
                  resident(OUT, HIDDEN),                           # linear weight
                  resident(OUT, 1)],                               # linear bias
        out_specs=pl.BlockSpec((SLAB_OUT, tb), lambda i: (0, i)),  # [lin|c1]
        compiler_params=pltpu.CompilerParams(
            dimension_semantics=("parallel",)),
    )(slab, w_gate, w_lin2, b_lin2)

    h_out = out[0:OUT, 0:B].T            # (B, 10)
    c_out = out[OUT:SLAB_OUT, 0:B].T     # (B, 3)
    return h_out, c_out


def _reference(x, h0, c0, w_ih, w_hh, b_ih, b_hh, w_lin, b_lin):
    gates = x @ w_ih.T + b_ih + h0 @ w_hh.T + b_hh
    i, f, g, o = jnp.split(gates, 4, axis=1)
    i, f, g, o = jax.nn.sigmoid(i), jax.nn.sigmoid(f), jnp.tanh(g), jax.nn.sigmoid(o)
    c1 = f * c0 + i * g
    h1 = o * jnp.tanh(c1)
    return h1 @ w_lin.T + b_lin, c1


if __name__ == "__main__":
    key = jax.random.PRNGKey(0)
    keys = jax.random.split(key, 8)

    # PyTorch-style uniform(-k, k), k = 1/sqrt(hidden).
    k = 1.0 / jnp.sqrt(jnp.float32(HIDDEN))
    w_ih = jax.random.uniform(keys[0], (4 * HIDDEN, INPUT), jnp.float32, -k, k)
    w_hh = jax.random.uniform(keys[1], (4 * HIDDEN, HIDDEN), jnp.float32, -k, k)
    b_ih = jax.random.uniform(keys[2], (4 * HIDDEN,), jnp.float32, -k, k)
    b_hh = jax.random.uniform(keys[3], (4 * HIDDEN,), jnp.float32, -k, k)
    w_lin = jax.random.uniform(keys[4], (OUT, HIDDEN), jnp.float32, -k, k)
    b_lin = jax.random.uniform(keys[5], (OUT,), jnp.float32, -k, k)

    ok = True
    for B in (8, 300):   # small single-tile case + padded multi-tile (grid=2) case
        kx, kh, kc = jax.random.split(jax.random.fold_in(keys[6], B), 3)
        x = jax.random.normal(kx, (B, INPUT), jnp.float32)
        h0 = jax.random.normal(kh, (B, HIDDEN), jnp.float32)
        c0 = jax.random.normal(kc, (B, HIDDEN), jnp.float32)

        h_out, c_out = lstm_unit_linear(x, h0, c0, w_ih, w_hh, b_ih, b_hh,
                                        w_lin, b_lin)
        jax.block_until_ready((h_out, c_out))

        h_ref, c_ref = _reference(x, h0, c0, w_ih, w_hh, b_ih, b_hh,
                                  w_lin, b_lin)
        ok &= h_out.shape == (B, OUT) and c_out.shape == (B, HIDDEN)
        ok &= bool(jnp.allclose(h_out, h_ref, atol=1e-5, rtol=1e-5))
        ok &= bool(jnp.allclose(c_out, c_ref, atol=1e-5, rtol=1e-5))

    assert ok
    print("KERNEL_OK")
</pallas_src>

<mosaic_0001>
module attributes {stable_mosaic.version = 11 : i64} {
  func.func @_lstm_linear_kernel(%arg0: i32, %arg1: memref<9x128xf32, #tpu.memory_space<vmem>>, %arg2: memref<12x6xf32, #tpu.memory_space<vmem>>, %arg3: memref<10x3xf32, #tpu.memory_space<vmem>>, %arg4: memref<10x1xf32, #tpu.memory_space<vmem>>, %arg5: memref<13x128xf32, #tpu.memory_space<vmem>>) attributes {dimension_semantics = [#tpu.dimension_semantics<parallel>], iteration_bounds = array<i64: 1>, scalar_prefetch = 0 : i64, scratch_operands = 0 : i64, tpu.core_type = #tpu.core_type<tc>, window_params = [{transform_indices = @transform_0, window_bounds = array<i64: 9, 128>}, {pipeline_mode = #tpu.pipeline_mode<synchronous>, transform_indices = @transform_1, window_bounds = array<i64: 12, 6>}, {pipeline_mode = #tpu.pipeline_mode<synchronous>, transform_indices = @transform_2, window_bounds = array<i64: 10, 3>}, {pipeline_mode = #tpu.pipeline_mode<synchronous>, transform_indices = @transform_3, window_bounds = array<i64: 10, 1>}, {transform_indices = @transform_4, window_bounds = array<i64: 13, 128>}]} {
    %c0 = arith.constant 0 : index
    %c0_0 = arith.constant 0 : index
    %0 = vector.load %arg1[%c0, %c0_0] : memref<9x128xf32, #tpu.memory_space<vmem>>, vector<9x128xf32>
    %1 = vector.extract_strided_slice %0 {offsets = [0, 0], sizes = [6, 128], strides = [1, 1]} : vector<9x128xf32> to vector<6x128xf32>
    %2 = vector.extract_strided_slice %0 {offsets = [6, 0], sizes = [3, 128], strides = [1, 1]} : vector<9x128xf32> to vector<3x128xf32>
    %c0_1 = arith.constant 0 : index
    %c0_2 = arith.constant 0 : index
    %3 = vector.load %arg2[%c0_1, %c0_2] : memref<12x6xf32, #tpu.memory_space<vmem>>, vector<12x6xf32>
    %cst = arith.constant dense<0.000000e+00> : vector<12x128xf32>
    %4 = tpu.matmul %3, %1, %cst {dimension_numbers = #tpu.dot_dimension_numbers<[1], [0], [0], [1], [0, 0, 1, 1], [], []>} : vector<12x6xf32>, vector<6x128xf32>, vector<12x128xf32> -> vector<12x128xf32>
    %5 = vector.extract_strided_slice %4 {offsets = [0, 0], sizes = [3, 128], strides = [1, 1]} : vector<12x128xf32> to vector<3x128xf32>
    %6 = arith.negf %5 : vector<3x128xf32>
    %7 = math.exp %6 : vector<3x128xf32>
    %cst_3 = arith.constant 1.000000e+00 : f32
    %8 = vector.broadcast %cst_3 : f32 to vector<3x128xf32>
    %9 = arith.addf %8, %7 : vector<3x128xf32>
    %10 = arith.divf %8, %9 : vector<3x128xf32>
    %11 = vector.extract_strided_slice %4 {offsets = [3, 0], sizes = [3, 128], strides = [1, 1]} : vector<12x128xf32> to vector<3x128xf32>
    %12 = arith.negf %11 : vector<3x128xf32>
    %13 = math.exp %12 : vector<3x128xf32>
    %cst_4 = arith.constant 1.000000e+00 : f32
    %14 = vector.broadcast %cst_4 : f32 to vector<3x128xf32>
    %15 = arith.addf %14, %13 : vector<3x128xf32>
    %16 = arith.divf %14, %15 : vector<3x128xf32>
    %17 = vector.extract_strided_slice %4 {offsets = [6, 0], sizes = [3, 128], strides = [1, 1]} : vector<12x128xf32> to vector<3x128xf32>
    %18 = math.tanh %17 : vector<3x128xf32>
    %19 = vector.extract_strided_slice %4 {offsets = [9, 0], sizes = [3, 128], strides = [1, 1]} : vector<12x128xf32> to vector<3x128xf32>
    %20 = arith.negf %19 : vector<3x128xf32>
    %21 = math.exp %20 : vector<3x128xf32>
    %cst_5 = arith.constant 1.000000e+00 : f32
    %22 = vector.broadcast %cst_5 : f32 to vector<3x128xf32>
    %23 = arith.addf %22, %21 : vector<3x128xf32>
    %24 = arith.divf %22, %23 : vector<3x128xf32>
    %25 = arith.mulf %16, %2 : vector<3x128xf32>
    %26 = arith.mulf %10, %18 : vector<3x128xf32>
    %27 = arith.addf %25, %26 : vector<3x128xf32>
    %28 = math.tanh %27 : vector<3x128xf32>
    %29 = arith.mulf %24, %28 : vector<3x128xf32>
    %c0_6 = arith.constant 0 : index
    %c0_7 = arith.constant 0 : index
    %30 = vector.load %arg3[%c0_6, %c0_7] : memref<10x3xf32, #tpu.memory_space<vmem>>, vector<10x3xf32>
    %cst_8 = arith.constant dense<0.000000e+00> : vector<10x128xf32>
    %31 = tpu.matmul %30, %29, %cst_8 {dimension_numbers = #tpu.dot_dimension_numbers<[1], [0], [0], [1], [0, 0, 1, 1], [], []>} : vector<10x3xf32>, vector<3x128xf32>, vector<10x128xf32> -> vector<10x128xf32>
    %c0_9 = arith.constant 0 : index
    %c0_10 = arith.constant 0 : index
    %32 = vector.load %arg4[%c0_9, %c0_10] : memref<10x1xf32, #tpu.memory_space<vmem>>, vector<10x1xf32>
    %33 = vector.broadcast %32 : vector<10x1xf32> to vector<10x128xf32>
    %34 = arith.addf %31, %33 : vector<10x128xf32>
    %c0_11 = arith.constant 0 : index
    %c0_12 = arith.constant 0 : index
    %35 = vector.load %arg5[%c0_11, %c0_12] : memref<13x128xf32, #tpu.memory_space<vmem>>, vector<10x128xf32>
    tpu.vector_store %arg5[%c0_11, %c0_12], %34 {strides = array<i32>} : memref<13x128xf32, #tpu.memory_space<vmem>>, vector<10x128xf32>,
    %c10 = arith.constant 10 : index
    %c0_13 = arith.constant 0 : index
    %36 = vector.load %arg5[%c10, %c0_13] : memref<13x128xf32, #tpu.memory_space<vmem>>, vector<3x128xf32>
    tpu.vector_store %arg5[%c10, %c0_13], %27 {strides = array<i32>} : memref<13x128xf32, #tpu.memory_space<vmem>>, vector<3x128xf32>,
    return
  }
  func.func @transform_0(%arg0: i32) -> (i32, i32) {
    %c0_i32 = arith.constant 0 : i32
    %c0_i32_0 = arith.constant 0 : i32
    return %c0_i32, %arg0 : i32, i32
  }
  func.func @transform_1(%arg0: i32) -> (i32, i32) {
    %c0_i32 = arith.constant 0 : i32
    %c0_i32_0 = arith.constant 0 : i32
    %c0_i32_1 = arith.constant 0 : i32
    return %c0_i32, %c0_i32_0 : i32, i32
  }
  func.func @transform_2(%arg0: i32) -> (i32, i32) {
    %c0_i32 = arith.constant 0 : i32
    %c0_i32_0 = arith.constant 0 : i32
    %c0_i32_1 = arith.constant 0 : i32
    return %c0_i32, %c0_i32_0 : i32, i32
  }
  func.func @transform_3(%arg0: i32) -> (i32, i32) {
    %c0_i32 = arith.constant 0 : i32
    %c0_i32_0 = arith.constant 0 : i32
    %c0_i32_1 = arith.constant 0 : i32
    return %c0_i32, %c0_i32_0 : i32, i32
  }
  func.func @transform_4(%arg0: i32) -> (i32, i32) {
    %c0_i32 = arith.constant 0 : i32
    %c0_i32_0 = arith.constant 0 : i32
    return %c0_i32, %arg0 : i32, i32
  }
}

</mosaic_0001>

<llo_original>
// kernel: tpu_custom_call.1
$region0: #{tpu_custom_call.1}
  #allocation0 [shape = 'u32[]', space=smem, size = 0x4, offset = 0x4, fixed_abs, tag = 'smem constant byte address 0x4 - core index']
  #allocation1 [shape = 'u32[72,128]{1,0:T(1,128)}', space=vmem, size = 0x9000, scoped, tag = 'internal scratch']
  %s0 = inlined_call_operand.vmem [shape: f32[9,128], index: 0, kind: input, shape index: {}]
  %s1 = inlined_call_operand.vmem [shape: f32[12,6], index: 1, kind: input, shape index: {}]
  %s2 = inlined_call_operand.vmem [shape: f32[10,3], index: 2, kind: input, shape index: {}]
  %s3 = inlined_call_operand.vmem [shape: f32[10,1], index: 3, kind: input, shape index: {}]
  %s4 = inlined_call_operand.hbm [shape: f32[13,128], index: 4, kind: output, shape index: {}]
  %s5 = sld [smem:[#allocation0]]
  $region26: #{tpu_custom_call.1} parent=0
    _
  %s7 = ssub.s32 1, %s5
  %s8 = scalar_select 0, %s7, %s5
  $region1: #{tpu_custom_call.1} parent=0
    #allocation2 [shape = 'u8[8192]{0}', space=vmem, size = 0x2000, scoped, tag = 'output window, operand 0, single buffered']
    #allocation3 [shape = 's32[1]{0}', space=sflag, size = 0x4, scoped, tag = 'scoped memory for tpu_custom_call.1']
    %9 = vsyncpa [#allocation3], 0
    // Predicated region
    $region2: #{tpu_custom_call.1} parent=1 // pred_check
      _
    $region3: #{tpu_custom_call.1} parent=1 // pred_check_branch
      %11 = sbr.rel (0) target = $region5
    $region4: #{tpu_custom_call.1} parent=1 // pred_region
      _
    $region5: #{tpu_custom_call.1} parent=1 // pred_fallthru
      _
    // Predicated region
    $region6: #{tpu_custom_call.1} parent=1 // pred_check
      _
    $region7: #{tpu_custom_call.1} parent=1 // pred_check_branch
      %13 = sbr.rel (0) target = $region9
    $region8: #{tpu_custom_call.1} parent=1 // pred_region
      _
    $region9: #{tpu_custom_call.1} parent=1 // pred_fallthru
      _
    // Predicated region
    $region10: #{tpu_custom_call.1} parent=1 // pred_check
      _
    $region11: #{tpu_custom_call.1} parent=1 // pred_check_branch
      %15 = sbr.rel (0) target = $region13
    $region12: #{tpu_custom_call.1} parent=1 // pred_region
      _
    $region13: #{tpu_custom_call.1} parent=1 // pred_fallthru
      _
    // Predicated region
    $region14: #{tpu_custom_call.1} parent=1 // pred_check
      _
    $region15: #{tpu_custom_call.1} parent=1 // pred_check_branch
      %17 = sbr.rel (0) target = $region17
    $region16: #{tpu_custom_call.1} parent=1 // pred_region
      _
    $region17: #{tpu_custom_call.1} parent=1 // pred_fallthru
      _
    %v18 = vld [vmem:[%s0] sm:$0xff]
    %v19 = vld [vmem:[%s0 + $0x8] sm:$0x1]
    %v20 = vld [vmem:[%s1] sm:$0xff]
    %v21 = vld [vmem:[%s1 + $0x8] sm:$0xf]
    %vm22 = vcmask 48128
    %v24 = vsel %vm22, %v20, 0
    %v27 = vsel %vm22, %v21, 0
    %vm29 = vcmask 1045504
    %v31 = vsel %vm29, %v18, 0
    %33 = vmatpush.msra.mxu0 0.0
    %34 = vmatpush.msra.mxu0 0.0
    %35 = vmatpush.msra.mxu0 0.0
    %36 = vmatpush.msra.mxu0 0.0
    %37 = vmatpush.msra.mxu0 0.0
    %38 = vmatpush.msra.mxu0 0.0
    %39 = vmatpush.msra.mxu0 0.0
    %40 = vmatpush.msra.mxu0 0.0
    %41 = vmatpush.msra.mxu0 0.0
    %42 = vmatpush.msra.mxu0 0.0
    %43 = vmatpush.msra.mxu0 0.0
    %44 = vmatpush.msra.mxu0 0.0
    %45 = vmatpush.msra.mxu0 0.0
    %46 = vmatpush.msra.mxu0 0.0
    %47 = vmatpush.msra.mxu0 0.0
    %48 = vmatpush.msra.mxu0 %v31
    %49 = vmatmul.f32.gmra.mxu0 %v24
    %v50 = vpop.f32.mrf.mxu0
    %v51 = vadd.f32 0.0, %v50
    %52 = vmatmul.f32.gmra.mxu0 %v27
    %v53 = vpop.f32.mrf.mxu0
    %v54 = vadd.f32 0.0, %v53
    %55 = vdwg.mxu0
    %v56 = vxor.u32 %v51, 2147483648
    %v57 = vmul.f32 %v56, 1.442695
    %v58 = vpow.pop %v57
    %v59 = vadd.f32 %v58, 1.0
    %v60 = vrcp.pop %v59
    %v61 = vmul.f32 %v59, %v60
    %v62 = vsub.f32 1.0, %v61
    %v63 = vmul.f32 %v60, %v62
    %v64 = vadd.f32 %v60, %v63
    %vm65 = vweird.f32 %v59
    %vm66 = vweird.f32 %v60
    %vm67 = vmor %vm65, %vm66
    %v68 = vsel %vm67, %v60, %v64
    %v69 = vand.u32 2147483647, %v59
    %vm70 = vcmp.eq.f32.partialorder %v69, 8.507059e+37
    %v71 = vand.u32 %v59, 2147483648
    %v72 = vor.u32 1.1754944e-38, %v71
    %v73 = vsel %vm70, %v72, %v68
    %v74 = vmul.f32 1.0, %v73
    %v75 = vtanh.pop %v51
    %v76 = vtanh.pop %v54
    %v77 = vxor.u32 %v54, 2147483648
    %v78 = vmul.f32 %v77, 1.442695
    %v79 = vpow.pop %v78
    %v80 = vadd.f32 %v79, 1.0
    %v81 = vrcp.pop %v80
    %v82 = vmul.f32 %v80, %v81
    %v83 = vsub.f32 1.0, %v82
    %v84 = vmul.f32 %v81, %v83
    %v85 = vadd.f32 %v81, %v84
    %vm86 = vweird.f32 %v80
    %vm87 = vweird.f32 %v81
    %vm88 = vmor %vm86, %vm87
    %v89 = vsel %vm88, %v81, %v85
    %v90 = vand.u32 2147483647, %v80
    %vm91 = vcmp.eq.f32.partialorder %v90, 8.507059e+37
    %v92 = vand.u32 %v80, 2147483648
    %v93 = vor.u32 1.1754944e-38, %v92
    %v94 = vsel %vm91, %v93, %v89
    %v95 = vmul.f32 1.0, %v94
    %vm97 = vcmask 1044480
    %v98 = vrot.slane %v18, 3
    %v99 = vrot.slane %v19, 3
    %v100 = vsel %vm97, %v98, %v99
    %v102 = vmul.f32 %v74, %v100
    %vm105 = vcmask 1041408
    %v106 = vrot.slane %v75, 6
    %v107 = vrot.slane %v76, 6
    %v108 = vsel %vm105, %v106, %v107
    %v110 = vmul.f32 %v74, %v108
    %v112 = vrot.slane %v110, 5
    %v114 = vadd.f32 %v102, %v112
    %v115 = vtanh.pop %v114
    %v117 = vrot.slane %v115, 2
    %v119 = vmul.f32 %v95, %v117
    %v120 = vld [vmem:[%s2] sm:$0xff]
    %v121 = vld [vmem:[%s2 + $0x8] sm:$0x3]
    %v122 = vld [vmem:[%s3] sm:$0xff]
    %v123 = vld [vmem:[%s3 + $0x8] sm:$0x3]
    %125 = vset.pattern.permute.xlu0 0
    %126 = vperm.xlu0 %125, %v122
    %v127 = vpop.permute.xlu0 %126
    %130 = vset.pattern.permute.xlu0 0
    %131 = vperm.xlu0 %130, %v123
    %v132 = vpop.permute.xlu0 %131
    %v135 = vrot.slane %v119, 1
    %vm136 = vcmask 23552
    %v138 = vsel %vm136, %v120, 0
    %v141 = vsel %vm136, %v121, 0
    %vm143 = vcmask 1042432
    %v144 = vsel %vm143, %v135, 0
    %146 = vmatpush.msra.mxu0 0.0
    %147 = vmatpush.msra.mxu0 0.0
    %148 = vmatpush.msra.mxu0 0.0
    %149 = vmatpush.msra.mxu0 0.0
    %150 = vmatpush.msra.mxu0 0.0
    %151 = vmatpush.msra.mxu0 0.0
    %152 = vmatpush.msra.mxu0 0.0
    %153 = vmatpush.msra.mxu0 0.0
    %154 = vmatpush.msra.mxu0 0.0
    %155 = vmatpush.msra.mxu0 0.0
    %156 = vmatpush.msra.mxu0 0.0
    %157 = vmatpush.msra.mxu0 0.0
    %158 = vmatpush.msra.mxu0 0.0
    %159 = vmatpush.msra.mxu0 0.0
    %160 = vmatpush.msra.mxu0 0.0
    %161 = vmatpush.msra.mxu0 %v144
    %162 = vmatmul.f32.gmra.mxu0 %v138
    %v163 = vpop.f32.mrf.mxu0
    %v164 = vadd.f32 %v127, %v163
    %165 = vmatmul.f32.gmra.mxu0 %v141
    %v166 = vpop.f32.mrf.mxu0
    %v167 = vadd.f32 %v132, %v166
    %168 = vdwg.mxu0
    %169 = vst [vmem:[#allocation2] sm:$0xff] %v164
    %170 = vst [vmem:[#allocation2 + $0x8] sm:$0x3] %v167
    %171 = vst [vmem:[#allocation2 + $0x7] sm:$0x38] %v114
    // Predicated region
    $region18: #{tpu_custom_call.1} parent=1 // pred_check
      _
    $region19: #{tpu_custom_call.1} parent=1 // pred_check_branch
      %173 = sbr.rel (0) target = $region21
    $region20: #{tpu_custom_call.1} parent=1 // pred_region
      %175 = vsyncadd [#allocation3], 0
      %s176 = sshll.u32 [#allocation2], 4
      %s177 = int_to_ptr.vmem [resolvable:$true] %s176
      %s178 = sshll.u32 %s4, 4
      %s179 = int_to_ptr.hbm [resolvable:$true] %s178
      %184 = dma.vmem_to_hbm [thread:$0]  %s177, 256, %s179, [#allocation3], 128, 128, 8
    $region21: #{tpu_custom_call.1} parent=1 // pred_fallthru
      _
    // Predicated region
    $region22: #{tpu_custom_call.1} parent=1 // pred_check
      _
    $region23: #{tpu_custom_call.1} parent=1 // pred_check_branch
      %186 = sbr.rel (0) target = $region25
    $region24: #{tpu_custom_call.1} parent=1 // pred_region
      %188 = dma.done [#allocation3], 256
    $region25: #{tpu_custom_call.1} parent=1 // pred_fallthru
      _
    %189 = vsyncpa [#allocation3], 1

</llo_original>
